<compile_context>
chip_gen: v5e
topology: v5e:2x2
jax: 0.10.0
libtpu: 0.0.40
codegen_flags: <defaults>
</compile_context>

<pallas_src>
import jax
import jax.numpy as jnp
from jax import lax
from jax.experimental import pallas as pl
from jax.experimental.pallas import tpu as pltpu

STRIDE = 2
LN_EPS = 1e-5


def _conv_out_len(l, k, s):
    return (l - k) // s + 1


# --------------------------------------------------------------------------
# Fused kernel (one batch element per grid step):
#   conv stack (K shifted matmuls / layer) + max-pool + folded tail + LayerNorm
# --------------------------------------------------------------------------
def _build_kernel(lens, chans, K, stride):
    n_layers = len(chans) - 1

    def kernel(*refs):
        i = 0
        x_ref = refs[i]; i += 1                                # (L_in, C_in)
        conv = []
        for _ in range(n_layers):
            conv.append((refs[i], refs[i + 1])); i += 2        # (K,Cp,Co), (1,Co)
        wt_ref, bt_ref = refs[i], refs[i + 1]                  # (C_last,E), (1,E)
        g_ref, be_ref = refs[i + 2], refs[i + 3]               # (1,E), (1,E)
        o_ref = refs[i + 4]                                    # (1,E)
        act_refs = refs[i + 5:]                                # n_layers-1 scratch

        # ---- ConvBlock stack: K accumulated matmuls of time-shifted blocks ----
        src = x_ref
        h_last = None
        for li, (w_ref, b_ref) in enumerate(conv):
            L_cur = lens[li + 1]
            # tap 0
            acc = jnp.dot(src[pl.ds(0, L_cur, stride=stride), :], w_ref[0],
                          preferred_element_type=jnp.float32)
            # remaining taps (strided bulk reads, no per-t scatter)
            for k in range(1, K):
                acc += jnp.dot(src[pl.ds(k, L_cur, stride=stride), :], w_ref[k],
                               preferred_element_type=jnp.float32)
            h = jnp.maximum(acc + b_ref[...], 0.0)             # conv + bias + ReLU
            if li + 1 < n_layers:
                act_refs[li][...] = h                          # stays in VMEM
                src = act_refs[li]
            else:
                h_last = h                                     # (L_last, C_last)

        # ---- global max-pool over time: single vectorized reduction ----
        pooled = jnp.max(h_last, axis=0, keepdims=True)        # (1, C_last)

        # ---- folded tail: 1x1 conv + seq-len-1 MHA + residual == one matmul ----
        hh = jnp.dot(pooled, wt_ref[...],
                     preferred_element_type=jnp.float32) + bt_ref[...]

        # ---- LayerNorm (biased variance, matching PyTorch) ----
        mean = jnp.mean(hh, axis=-1, keepdims=True)
        var = jnp.mean((hh - mean) ** 2, axis=-1, keepdims=True)
        hn = (hh - mean) * lax.rsqrt(var + LN_EPS)
        o_ref[...] = (hn * g_ref[...] + be_ref[...]).astype(o_ref.dtype)

    return kernel


# --------------------------------------------------------------------------
# One-time weight prepack (hoisted out of forward): conv weights -> (K, Cin, Cout),
# tail fold  W_tail = W1x1^T (Wv^T Wo^T + I),  b_tail = b1x1 M + bv Wo^T + bo.
# --------------------------------------------------------------------------
def pack_params(params):
    convs = []
    for w, b in params["convs"]:
        c_out, c_prev, k = w.shape
        convs.append((jnp.transpose(w, (2, 1, 0)),             # (K, C_prev, C_out)
                      b.reshape(1, c_out)))
    E = params["w1x1"].shape[0]
    wo_t = params["wo"].T                                      # (E, E)
    m = params["wv"].T @ wo_t + jnp.eye(E, dtype=jnp.float32)  # Wv^T Wo^T + I
    w_tail = params["w1x1"].T @ m                              # (C_last, E)
    b_tail = params["b1x1"] @ m + params["bv"] @ wo_t + params["bo"]
    return dict(convs=convs,
                w_tail=w_tail, b_tail=b_tail.reshape(1, E),
                gamma=params["gamma"].reshape(1, E),
                beta=params["beta"].reshape(1, E))


def forward(packed, x):
    """x: (B, L, C_in) channels-last.  Returns (B, E, 1)."""
    B, L, C_in = x.shape
    convs = packed["convs"]
    K = convs[0][0].shape[0]
    chans = [C_in] + [w.shape[2] for w, _ in convs]
    lens = [L]
    for _ in convs:
        lens.append(_conv_out_len(lens[-1], K, STRIDE))
    E = packed["w_tail"].shape[1]
    n_layers = len(convs)

    kernel = _build_kernel(lens, chans, K, STRIDE)

    const3 = lambda b: (0, 0, 0)    # weights: fetched once, resident across grid
    const2 = lambda b: (0, 0)

    inputs = [x.astype(jnp.float32)]
    in_specs = [pl.BlockSpec((None, L, C_in), lambda b: (b, 0, 0))]   # per-sample tile
    for w, bias in convs:
        inputs += [w, bias]
        in_specs += [pl.BlockSpec(w.shape, const3),
                     pl.BlockSpec(bias.shape, const2)]
    for name in ("w_tail", "b_tail", "gamma", "beta"):
        inputs.append(packed[name])
        in_specs.append(pl.BlockSpec(packed[name].shape, const2))

    # Per-sample intermediate activations stay resident in VMEM.
    scratch = [pltpu.VMEM((lens[i + 1], chans[i + 1]), jnp.float32)
               for i in range(n_layers - 1)]

    y = pl.pallas_call(
        kernel,
        grid=(B,),                                             # batch is fully parallel
        out_shape=jax.ShapeDtypeStruct((B, 1, E), jnp.float32),
        in_specs=in_specs,
        out_specs=pl.BlockSpec((None, 1, E), lambda b: (b, 0, 0)),
        scratch_shapes=scratch,
        compiler_params=pltpu.CompilerParams(
            dimension_semantics=("parallel",)),                # megacore sharding on v7x
    )(*inputs)
    return jnp.transpose(y, (0, 2, 1))                         # (B, E, 1)


# --------------------------------------------------------------------------
# Deterministic parameter construction (synthetic weights, PyTorch shapes)
# --------------------------------------------------------------------------
def init_params(key, num_inputs, num_channels, embedding_dim, kernel_size):
    keys = jax.random.split(key, 16)
    ki = iter(keys)
    convs = []
    in_c = num_inputs
    for out_c in num_channels:
        w = 0.1 * jax.random.normal(next(ki), (out_c, in_c, kernel_size), jnp.float32)
        b = 0.1 * jax.random.normal(next(ki), (out_c,), jnp.float32)
        convs.append((w, b))
        in_c = out_c

    E = embedding_dim
    w1x1 = 0.1 * jax.random.normal(next(ki), (E, in_c), jnp.float32)   # Conv1d(in_c,E,1)
    b1x1 = 0.1 * jax.random.normal(next(ki), (E,), jnp.float32)

    # nn.MultiheadAttention in_proj: (3E, E); only the V chunk matters at seq_len == 1.
    in_proj_w = 0.1 * jax.random.normal(next(ki), (3 * E, E), jnp.float32)
    in_proj_b = 0.1 * jax.random.normal(next(ki), (3 * E,), jnp.float32)
    wv = in_proj_w[2 * E:3 * E]
    bv = in_proj_b[2 * E:3 * E]
    wo = 0.1 * jax.random.normal(next(ki), (E, E), jnp.float32)        # out_proj
    bo = 0.1 * jax.random.normal(next(ki), (E,), jnp.float32)

    gamma = jnp.ones((E,), jnp.float32)
    beta = jnp.zeros((E,), jnp.float32)

    return dict(convs=convs, w1x1=w1x1, b1x1=b1x1, wv=wv, bv=bv,
                wo=wo, bo=bo, gamma=gamma, beta=beta)


# --------------------------------------------------------------------------
# Pure-JAX reference (unfolded, for correctness check)
# --------------------------------------------------------------------------
def reference(params, x):
    h = jnp.transpose(x, (0, 2, 1))                             # (B, C_in, L)
    for w, b in params["convs"]:
        h = lax.conv_general_dilated(h, w, (STRIDE,), "VALID",
                                     dimension_numbers=("NCH", "OIH", "NCH"))
        h = jnp.maximum(h + b[None, :, None], 0.0)
    pooled = jnp.max(h, axis=-1)
    emb = pooled @ params["w1x1"].T + params["b1x1"]
    v = emb @ params["wv"].T + params["bv"]
    attn = v @ params["wo"].T + params["bo"]
    hh = attn + emb
    mean = hh.mean(-1, keepdims=True)
    var = ((hh - mean) ** 2).mean(-1, keepdims=True)
    y = (hh - mean) / jnp.sqrt(var + LN_EPS) * params["gamma"] + params["beta"]
    return y[:, :, None]


if __name__ == "__main__":
    # Small shapes consistent with the module.
    B, L, C_in = 2, 16, 4
    num_channels = (8, 16)
    embedding_dim = 32
    kernel_size = 3

    key = jax.random.PRNGKey(0)
    kp, kx = jax.random.split(key)
    params = init_params(kp, C_in, num_channels, embedding_dim, kernel_size)
    packed = pack_params(params)        # one-time prepack (outside forward)
    x = jax.random.normal(kx, (B, L, C_in), jnp.float32)

    out = jax.block_until_ready(forward(packed, x))
    ref = jax.block_until_ready(reference(params, x))

    assert out.shape == (B, embedding_dim, 1), out.shape
    err = float(jnp.max(jnp.abs(out - ref)))
    assert jnp.allclose(out, ref, atol=2e-4, rtol=2e-4), err

    print("KERNEL_OK")
</pallas_src>

<mosaic_0001>
module attributes {stable_mosaic.version = 11 : i64} {
  func.func @kernel(%arg0: i32, %arg1: memref<1x16x4xf32, #tpu.memory_space<vmem>>, %arg2: memref<3x4x8xf32, #tpu.memory_space<vmem>>, %arg3: memref<1x8xf32, #tpu.memory_space<vmem>>, %arg4: memref<3x8x16xf32, #tpu.memory_space<vmem>>, %arg5: memref<1x16xf32, #tpu.memory_space<vmem>>, %arg6: memref<16x32xf32, #tpu.memory_space<vmem>>, %arg7: memref<1x32xf32, #tpu.memory_space<vmem>>, %arg8: memref<1x32xf32, #tpu.memory_space<vmem>>, %arg9: memref<1x32xf32, #tpu.memory_space<vmem>>, %arg10: memref<1x1x32xf32, #tpu.memory_space<vmem>>, %arg11: memref<7x8xf32, #tpu.memory_space<vmem>>) attributes {dimension_semantics = [#tpu.dimension_semantics<parallel>], iteration_bounds = array<i64: 2>, scalar_prefetch = 0 : i64, scratch_operands = 1 : i64, tpu.core_type = #tpu.core_type<tc>, window_params = [{transform_indices = @transform_0, window_bounds = array<i64: 1, 16, 4>}, {pipeline_mode = #tpu.pipeline_mode<synchronous>, transform_indices = @transform_1, window_bounds = array<i64: 3, 4, 8>}, {pipeline_mode = #tpu.pipeline_mode<synchronous>, transform_indices = @transform_2, window_bounds = array<i64: 1, 8>}, {pipeline_mode = #tpu.pipeline_mode<synchronous>, transform_indices = @transform_3, window_bounds = array<i64: 3, 8, 16>}, {pipeline_mode = #tpu.pipeline_mode<synchronous>, transform_indices = @transform_4, window_bounds = array<i64: 1, 16>}, {pipeline_mode = #tpu.pipeline_mode<synchronous>, transform_indices = @transform_5, window_bounds = array<i64: 16, 32>}, {pipeline_mode = #tpu.pipeline_mode<synchronous>, transform_indices = @transform_6, window_bounds = array<i64: 1, 32>}, {pipeline_mode = #tpu.pipeline_mode<synchronous>, transform_indices = @transform_7, window_bounds = array<i64: 1, 32>}, {pipeline_mode = #tpu.pipeline_mode<synchronous>, transform_indices = @transform_8, window_bounds = array<i64: 1, 32>}, {transform_indices = @transform_9, window_bounds = array<i64: 1, 1, 32>}]} {
    %c0 = arith.constant 0 : index
    %c0_0 = arith.constant 0 : index
    %c0_1 = arith.constant 0 : index
    %0 = tpu.strided_load %arg1[%c0, %c0_0, %c0_1] {strides = array<i32: 1, 2, 1>} : memref<1x16x4xf32, #tpu.memory_space<vmem>>, vector<1x7x4xf32>
    %1 = vector.shape_cast %0 : vector<1x7x4xf32> to vector<7x4xf32>
    %c0_2 = arith.constant 0 : index
    %c0_3 = arith.constant 0 : index
    %c0_4 = arith.constant 0 : index
    %2 = vector.load %arg2[%c0_2, %c0_3, %c0_4] : memref<3x4x8xf32, #tpu.memory_space<vmem>>, vector<1x4x8xf32>
    %3 = vector.shape_cast %2 : vector<1x4x8xf32> to vector<4x8xf32>
    %cst = arith.constant dense<0.000000e+00> : vector<7x8xf32>
    %4 = tpu.matmul %1, %3, %cst {dimension_numbers = #tpu.dot_dimension_numbers<[1], [0], [0], [1], [0, 0, 1, 1], [], []>} : vector<7x4xf32>, vector<4x8xf32>, vector<7x8xf32> -> vector<7x8xf32>
    %c0_5 = arith.constant 0 : index
    %c1 = arith.constant 1 : index
    %c0_6 = arith.constant 0 : index
    %5 = tpu.strided_load %arg1[%c0_5, %c1, %c0_6] {strides = array<i32: 1, 2, 1>} : memref<1x16x4xf32, #tpu.memory_space<vmem>>, vector<1x7x4xf32>
    %6 = vector.shape_cast %5 : vector<1x7x4xf32> to vector<7x4xf32>
    %c1_7 = arith.constant 1 : index
    %c0_8 = arith.constant 0 : index
    %c0_9 = arith.constant 0 : index
    %7 = vector.load %arg2[%c1_7, %c0_8, %c0_9] : memref<3x4x8xf32, #tpu.memory_space<vmem>>, vector<1x4x8xf32>
    %8 = vector.shape_cast %7 : vector<1x4x8xf32> to vector<4x8xf32>
    %cst_10 = arith.constant dense<0.000000e+00> : vector<7x8xf32>
    %9 = tpu.matmul %6, %8, %cst_10 {dimension_numbers = #tpu.dot_dimension_numbers<[1], [0], [0], [1], [0, 0, 1, 1], [], []>} : vector<7x4xf32>, vector<4x8xf32>, vector<7x8xf32> -> vector<7x8xf32>
    %10 = arith.addf %4, %9 : vector<7x8xf32>
    %c0_11 = arith.constant 0 : index
    %c2 = arith.constant 2 : index
    %c0_12 = arith.constant 0 : index
    %11 = tpu.strided_load %arg1[%c0_11, %c2, %c0_12] {strides = array<i32: 1, 2, 1>} : memref<1x16x4xf32, #tpu.memory_space<vmem>>, vector<1x7x4xf32>
    %12 = vector.shape_cast %11 : vector<1x7x4xf32> to vector<7x4xf32>
    %c2_13 = arith.constant 2 : index
    %c0_14 = arith.constant 0 : index
    %c0_15 = arith.constant 0 : index
    %13 = vector.load %arg2[%c2_13, %c0_14, %c0_15] : memref<3x4x8xf32, #tpu.memory_space<vmem>>, vector<1x4x8xf32>
    %14 = vector.shape_cast %13 : vector<1x4x8xf32> to vector<4x8xf32>
    %cst_16 = arith.constant dense<0.000000e+00> : vector<7x8xf32>
    %15 = tpu.matmul %12, %14, %cst_16 {dimension_numbers = #tpu.dot_dimension_numbers<[1], [0], [0], [1], [0, 0, 1, 1], [], []>} : vector<7x4xf32>, vector<4x8xf32>, vector<7x8xf32> -> vector<7x8xf32>
    %16 = arith.addf %10, %15 : vector<7x8xf32>
    %c0_17 = arith.constant 0 : index
    %c0_18 = arith.constant 0 : index
    %17 = vector.load %arg3[%c0_17, %c0_18] : memref<1x8xf32, #tpu.memory_space<vmem>>, vector<1x8xf32>
    %18 = vector.broadcast %17 : vector<1x8xf32> to vector<7x8xf32>
    %19 = arith.addf %16, %18 : vector<7x8xf32>
    %cst_19 = arith.constant 0.000000e+00 : f32
    %20 = vector.broadcast %cst_19 : f32 to vector<7x8xf32>
    %21 = arith.maximumf %19, %20 : vector<7x8xf32>
    %c0_20 = arith.constant 0 : index
    %c0_21 = arith.constant 0 : index
    %22 = vector.load %arg11[%c0_20, %c0_21] : memref<7x8xf32, #tpu.memory_space<vmem>>, vector<7x8xf32>
    tpu.vector_store %arg11[%c0_20, %c0_21], %21 {strides = array<i32>} : memref<7x8xf32, #tpu.memory_space<vmem>>, vector<7x8xf32>,
    %c0_22 = arith.constant 0 : index
    %c0_23 = arith.constant 0 : index
    %23 = tpu.strided_load %arg11[%c0_22, %c0_23] {strides = array<i32: 2, 1>} : memref<7x8xf32, #tpu.memory_space<vmem>>, vector<3x8xf32>
    %c0_24 = arith.constant 0 : index
    %c0_25 = arith.constant 0 : index
    %c0_26 = arith.constant 0 : index
    %24 = vector.load %arg4[%c0_24, %c0_25, %c0_26] : memref<3x8x16xf32, #tpu.memory_space<vmem>>, vector<1x8x16xf32>
    %25 = vector.shape_cast %24 : vector<1x8x16xf32> to vector<8x16xf32>
    %cst_27 = arith.constant dense<0.000000e+00> : vector<3x16xf32>
    %26 = tpu.matmul %23, %25, %cst_27 {dimension_numbers = #tpu.dot_dimension_numbers<[1], [0], [0], [1], [0, 0, 1, 1], [], []>} : vector<3x8xf32>, vector<8x16xf32>, vector<3x16xf32> -> vector<3x16xf32>
    %c1_28 = arith.constant 1 : index
    %c0_29 = arith.constant 0 : index
    %27 = tpu.strided_load %arg11[%c1_28, %c0_29] {strides = array<i32: 2, 1>} : memref<7x8xf32, #tpu.memory_space<vmem>>, vector<3x8xf32>
    %c1_30 = arith.constant 1 : index
    %c0_31 = arith.constant 0 : index
    %c0_32 = arith.constant 0 : index
    %28 = vector.load %arg4[%c1_30, %c0_31, %c0_32] : memref<3x8x16xf32, #tpu.memory_space<vmem>>, vector<1x8x16xf32>
    %29 = vector.shape_cast %28 : vector<1x8x16xf32> to vector<8x16xf32>
    %cst_33 = arith.constant dense<0.000000e+00> : vector<3x16xf32>
    %30 = tpu.matmul %27, %29, %cst_33 {dimension_numbers = #tpu.dot_dimension_numbers<[1], [0], [0], [1], [0, 0, 1, 1], [], []>} : vector<3x8xf32>, vector<8x16xf32>, vector<3x16xf32> -> vector<3x16xf32>
    %31 = arith.addf %26, %30 : vector<3x16xf32>
    %c2_34 = arith.constant 2 : index
    %c0_35 = arith.constant 0 : index
    %32 = tpu.strided_load %arg11[%c2_34, %c0_35] {strides = array<i32: 2, 1>} : memref<7x8xf32, #tpu.memory_space<vmem>>, vector<3x8xf32>
    %c2_36 = arith.constant 2 : index
    %c0_37 = arith.constant 0 : index
    %c0_38 = arith.constant 0 : index
    %33 = vector.load %arg4[%c2_36, %c0_37, %c0_38] : memref<3x8x16xf32, #tpu.memory_space<vmem>>, vector<1x8x16xf32>
    %34 = vector.shape_cast %33 : vector<1x8x16xf32> to vector<8x16xf32>
    %cst_39 = arith.constant dense<0.000000e+00> : vector<3x16xf32>
    %35 = tpu.matmul %32, %34, %cst_39 {dimension_numbers = #tpu.dot_dimension_numbers<[1], [0], [0], [1], [0, 0, 1, 1], [], []>} : vector<3x8xf32>, vector<8x16xf32>, vector<3x16xf32> -> vector<3x16xf32>
    %36 = arith.addf %31, %35 : vector<3x16xf32>
    %c0_40 = arith.constant 0 : index
    %c0_41 = arith.constant 0 : index
    %37 = vector.load %arg5[%c0_40, %c0_41] : memref<1x16xf32, #tpu.memory_space<vmem>>, vector<1x16xf32>
    %38 = vector.broadcast %37 : vector<1x16xf32> to vector<3x16xf32>
    %39 = arith.addf %36, %38 : vector<3x16xf32>
    %cst_42 = arith.constant 0.000000e+00 : f32
    %40 = vector.broadcast %cst_42 : f32 to vector<3x16xf32>
    %41 = arith.maximumf %39, %40 : vector<3x16xf32>
    %cst_43 = arith.constant dense<0xFF800000> : vector<16xf32>
    %42 = vector.multi_reduction <maximumf>, %41, %cst_43 [0] : vector<3x16xf32> to vector<16xf32>
    %43 = vector.shape_cast %42 : vector<16xf32> to vector<1x16xf32>
    %c0_44 = arith.constant 0 : index
    %c0_45 = arith.constant 0 : index
    %44 = vector.load %arg6[%c0_44, %c0_45] : memref<16x32xf32, #tpu.memory_space<vmem>>, vector<16x32xf32>
    %cst_46 = arith.constant dense<0.000000e+00> : vector<1x32xf32>
    %45 = tpu.matmul %43, %44, %cst_46 {dimension_numbers = #tpu.dot_dimension_numbers<[1], [0], [0], [1], [0, 0, 1, 1], [], []>} : vector<1x16xf32>, vector<16x32xf32>, vector<1x32xf32> -> vector<1x32xf32>
    %c0_47 = arith.constant 0 : index
    %c0_48 = arith.constant 0 : index
    %46 = vector.load %arg7[%c0_47, %c0_48] : memref<1x32xf32, #tpu.memory_space<vmem>>, vector<1x32xf32>
    %47 = arith.addf %45, %46 : vector<1x32xf32>
    %cst_49 = arith.constant dense<0.000000e+00> : vector<1xf32>
    %48 = vector.multi_reduction <add>, %47, %cst_49 [1] : vector<1x32xf32> to vector<1xf32>
    %49 = vector.shape_cast %48 : vector<1xf32> to vector<1x1xf32>
    %cst_50 = arith.constant 3.200000e+01 : f32
    %50 = vector.broadcast %cst_50 : f32 to vector<1x1xf32>
    %51 = arith.divf %49, %50 : vector<1x1xf32>
    %52 = vector.broadcast %51 : vector<1x1xf32> to vector<1x32xf32>
    %53 = arith.subf %47, %52 : vector<1x32xf32>
    %54 = arith.mulf %53, %53 : vector<1x32xf32>
    %cst_51 = arith.constant dense<0.000000e+00> : vector<1xf32>
    %55 = vector.multi_reduction <add>, %54, %cst_51 [1] : vector<1x32xf32> to vector<1xf32>
    %56 = vector.shape_cast %55 : vector<1xf32> to vector<1x1xf32>
    %cst_52 = arith.constant 3.200000e+01 : f32
    %57 = vector.broadcast %cst_52 : f32 to vector<1x1xf32>
    %58 = arith.divf %56, %57 : vector<1x1xf32>
    %59 = vector.broadcast %51 : vector<1x1xf32> to vector<1x32xf32>
    %60 = arith.subf %47, %59 : vector<1x32xf32>
    %cst_53 = arith.constant 9.99999974E-6 : f32
    %61 = vector.broadcast %cst_53 : f32 to vector<1x1xf32>
    %62 = arith.addf %58, %61 : vector<1x1xf32>
    %63 = math.rsqrt %62 : vector<1x1xf32>
    %64 = vector.broadcast %63 : vector<1x1xf32> to vector<1x32xf32>
    %65 = arith.mulf %60, %64 : vector<1x32xf32>
    %c0_54 = arith.constant 0 : index
    %c0_55 = arith.constant 0 : index
    %66 = vector.load %arg8[%c0_54, %c0_55] : memref<1x32xf32, #tpu.memory_space<vmem>>, vector<1x32xf32>
    %67 = arith.mulf %65, %66 : vector<1x32xf32>
    %c0_56 = arith.constant 0 : index
    %c0_57 = arith.constant 0 : index
    %68 = vector.load %arg9[%c0_56, %c0_57] : memref<1x32xf32, #tpu.memory_space<vmem>>, vector<1x32xf32>
    %69 = arith.addf %67, %68 : vector<1x32xf32>
    %c0_58 = arith.constant 0 : index
    %c0_59 = arith.constant 0 : index
    %c0_60 = arith.constant 0 : index
    %70 = vector.load %arg10[%c0_58, %c0_59, %c0_60] : memref<1x1x32xf32, #tpu.memory_space<vmem>>, vector<1x1x32xf32>
    %71 = vector.shape_cast %70 : vector<1x1x32xf32> to vector<1x32xf32>
    %72 = vector.shape_cast %69 : vector<1x32xf32> to vector<1x1x32xf32>
    tpu.vector_store %arg10[%c0_58, %c0_59, %c0_60], %72 {strides = array<i32>} : memref<1x1x32xf32, #tpu.memory_space<vmem>>, vector<1x1x32xf32>,
    return
  }
  func.func @transform_0(%arg0: i32) -> (i32, i32, i32) {
    %c0_i32 = arith.constant 0 : i32
    %c0_i32_0 = arith.constant 0 : i32
    %c0_i32_1 = arith.constant 0 : i32
    return %arg0, %c0_i32, %c0_i32_0 : i32, i32, i32
  }
  func.func @transform_1(%arg0: i32) -> (i32, i32, i32) {
    %c0_i32 = arith.constant 0 : i32
    %c0_i32_0 = arith.constant 0 : i32
    %c0_i32_1 = arith.constant 0 : i32
    %c0_i32_2 = arith.constant 0 : i32
    return %c0_i32, %c0_i32_0, %c0_i32_1 : i32, i32, i32
  }
  func.func @transform_2(%arg0: i32) -> (i32, i32) {
    %c0_i32 = arith.constant 0 : i32
    %c0_i32_0 = arith.constant 0 : i32
    %c0_i32_1 = arith.constant 0 : i32
    return %c0_i32, %c0_i32_0 : i32, i32
  }
  func.func @transform_3(%arg0: i32) -> (i32, i32, i32) {
    %c0_i32 = arith.constant 0 : i32
    %c0_i32_0 = arith.constant 0 : i32
    %c0_i32_1 = arith.constant 0 : i32
    %c0_i32_2 = arith.constant 0 : i32
    return %c0_i32, %c0_i32_0, %c0_i32_1 : i32, i32, i32
  }
  func.func @transform_4(%arg0: i32) -> (i32, i32) {
    %c0_i32 = arith.constant 0 : i32
    %c0_i32_0 = arith.constant 0 : i32
    %c0_i32_1 = arith.constant 0 : i32
    return %c0_i32, %c0_i32_0 : i32, i32
  }
  func.func @transform_5(%arg0: i32) -> (i32, i32) {
    %c0_i32 = arith.constant 0 : i32
    %c0_i32_0 = arith.constant 0 : i32
    %c0_i32_1 = arith.constant 0 : i32
    return %c0_i32, %c0_i32_0 : i32, i32
  }
  func.func @transform_6(%arg0: i32) -> (i32, i32) {
    %c0_i32 = arith.constant 0 : i32
    %c0_i32_0 = arith.constant 0 : i32
    %c0_i32_1 = arith.constant 0 : i32
    return %c0_i32, %c0_i32_0 : i32, i32
  }
  func.func @transform_7(%arg0: i32) -> (i32, i32) {
    %c0_i32 = arith.constant 0 : i32
    %c0_i32_0 = arith.constant 0 : i32
    %c0_i32_1 = arith.constant 0 : i32
    return %c0_i32, %c0_i32_0 : i32, i32
  }
  func.func @transform_8(%arg0: i32) -> (i32, i32) {
    %c0_i32 = arith.constant 0 : i32
    %c0_i32_0 = arith.constant 0 : i32
    %c0_i32_1 = arith.constant 0 : i32
    return %c0_i32, %c0_i32_0 : i32, i32
  }
  func.func @transform_9(%arg0: i32) -> (i32, i32, i32) {
    %c0_i32 = arith.constant 0 : i32
    %c0_i32_0 = arith.constant 0 : i32
    %c0_i32_1 = arith.constant 0 : i32
    return %arg0, %c0_i32, %c0_i32_0 : i32, i32, i32
  }
}

</mosaic_0001>

<llo_original>
// kernel: tpu_custom_call.1
$region0: #{tpu_custom_call.1}
  #allocation0 [shape = 'u32[]', space=smem, size = 0x4, offset = 0x4, fixed_abs, tag = 'smem constant byte address 0x4 - core index']
  #allocation1 [shape = 'u32[72,128]{1,0:T(1,128)}', space=vmem, size = 0x9000, scoped, tag = 'internal scratch']
  #allocation2 [shape = 'f32[7,8]{1,0:T(8,128)}', space=vmem, size = 0x1000, scoped, tag = 'scratch operand']
  %s0 = inlined_call_operand.vmem [shape: f32[2,16,4], index: 0, kind: input, shape index: {}]
  %s1 = inlined_call_operand.hbm [shape: f32[3,4,8], index: 1, kind: input, shape index: {}]
  %s2 = inlined_call_operand.vmem [shape: f32[1,8], index: 2, kind: input, shape index: {}]
  %s3 = inlined_call_operand.vmem [shape: f32[3,8,16], index: 3, kind: input, shape index: {}]
  %s4 = inlined_call_operand.vmem [shape: f32[1,16], index: 4, kind: input, shape index: {}]
  %s5 = inlined_call_operand.vmem [shape: f32[16,32], index: 5, kind: input, shape index: {}]
  %s6 = inlined_call_operand.vmem [shape: f32[1,32], index: 6, kind: input, shape index: {}]
  %s7 = inlined_call_operand.vmem [shape: f32[1,32], index: 7, kind: input, shape index: {}]
  %s8 = inlined_call_operand.vmem [shape: f32[1,32], index: 8, kind: input, shape index: {}]
  %s9 = inlined_call_operand.hbm [shape: f32[2,1,32], index: 9, kind: output, shape index: {}]
  %s10 = sld [smem:[#allocation0]]
  $region73: #{tpu_custom_call.1} parent=0
    _
  %s12 = ssub.s32 1, %s10
  %s13 = scalar_select 0, %s12, %s10
  $region1: #{tpu_custom_call.1} parent=0
    #allocation3 [shape = 'u8[6144]{0}', space=vmem, size = 0x1800, scoped, tag = 'input window, operand 1, single buffered']
    #allocation4 [shape = 's32[2]{0}', space=sflag, size = 0x8, scoped, tag = 'scoped memory for tpu_custom_call.1']
    #allocation5 [shape = 's32[2]{0}', space=sflag, size = 0x8, scoped, tag = 'scoped memory for tpu_custom_call.1']
    #allocation6 [shape = 'u8[1024]{0}', space=vmem, size = 0x400, scoped, tag = 'output window, operand 0']
    %14 = vsyncpa [#allocation4], 0
    %15 = vsyncpa [#allocation5], 0
    %s16 = scalar_lea.sflag [#allocation5], 1
    %17 = vsyncpa %s16, 0
    loop: start=0, step=1, limit=4
    $region2: #{tpu_custom_call.1} parent=1 // loop_pre_header
      _
    $region3: #{tpu_custom_call.1} parent=1 // loop_header
      %s19 = sphi 0, %s23
      %p20 = scmp.ge.s32.totalorder %s19, 4
      %s29 = sphi 0, %s31
      %s32 = sphi 0, %s29
      %s33 = sphi 0, %s32
      %s49 = sphi 0, %s33
      %s53 = sphi 0, %s53
      %s55 = sphi 0, %s53
      %s56 = sphi 0, %s55
      %s70 = sphi 0, %s56
      %s74 = sphi 0, %s74
      %s76 = sphi 0, %s74
      %s77 = sphi 0, %s76
      %s91 = sphi 0, %s77
      %s95 = sphi 0, %s95
      %s97 = sphi 0, %s95
      %s98 = sphi 0, %s97
      %s112 = sphi 0, %s98
      %s116 = sphi 0, %s116
      %s118 = sphi 0, %s116
      %s119 = sphi 0, %s118
      %s133 = sphi 0, %s119
      %s137 = sphi 0, %s137
      %s139 = sphi 0, %s137
      %s140 = sphi 0, %s139
      %s154 = sphi 0, %s140
      %s158 = sphi 0, %s158
      %s160 = sphi 0, %s158
      %s161 = sphi 0, %s160
      %s175 = sphi 0, %s161
      %s179 = sphi 0, %s179
      %s181 = sphi 0, %s179
      %s182 = sphi 0, %s181
      %s196 = sphi 0, %s182
      %s200 = sphi 0, %s200
      %s202 = sphi 0, %s200
      %s203 = sphi 0, %s202
      %s217 = sphi 0, %s203
      %s223 = sphi 0, %s225
      %s226 = sphi 0, %s223
      %s227 = sphi 0, %s226
      %s243 = sphi 0, %s227
    $region4: #{tpu_custom_call.1} parent=1 // loop_header_branch
      %22 = sbr.rel (%p20) target = $region8
    $region5: #{tpu_custom_call.1} parent=1 // loop_body
      %s24 = ssub.s32 %s19, 1
      %s25 = ssub.s32 %s19, 2
      %s26 = sadd.s32 %s19, 1
      %s27 = ssub.s32 %s19, %s26
      %p28 = scmp.eq.s32.totalorder %s27, 0
      %s30 = sadd.s32 %s29, 1
      %s31 = scalar_select %p28, %s29, %s30
      %p34 = pneg %p28
      %p35 = scmp.eq.s32.totalorder %s19, 1
      %p36 = por %p34, %p35
      %p37 = scmp.ne.s32.totalorder %s29, %s32
      %p38 = scmp.eq.s32.totalorder %s19, 0
      %p39 = por %p37, %p38
      %p40 = scmp.ne.s32.totalorder %s29, %s32
      %p41 = scmp.eq.s32.totalorder %s24, 1
      %p42 = por %p40, %p41
      %p43 = scmp.ne.s32.totalorder %s32, %s33
      %p44 = scmp.eq.s32.totalorder %s24, 0
      %p45 = por %p43, %p44
      %p46 = scmp.ne.s32.totalorder %s32, %s33
      %p47 = scmp.eq.s32.totalorder %s25, 1
      %p48 = por %p46, %p47
      %p50 = scmp.ne.s32.totalorder %s33, %s49
      %p51 = scmp.eq.s32.totalorder %s25, 0
      %p52 = por %p50, %p51
      %s54 = sadd.s32 %s53, 1
      %p57 = scmp.eq.s32.totalorder %s19, 1
      %p58 = scmp.ne.s32.totalorder %s53, %s55
      %p59 = scmp.eq.s32.totalorder %s19, 0
      %p60 = por %p58, %p59
      %p61 = scmp.ne.s32.totalorder %s53, %s55
      %p62 = scmp.eq.s32.totalorder %s24, 1
      %p63 = por %p61, %p62
      %p64 = scmp.ne.s32.totalorder %s55, %s56
      %p65 = scmp.eq.s32.totalorder %s24, 0
      %p66 = por %p64, %p65
      %p67 = scmp.ne.s32.totalorder %s55, %s56
      %p68 = scmp.eq.s32.totalorder %s25, 1
      %p69 = por %p67, %p68
      %p71 = scmp.ne.s32.totalorder %s56, %s70
      %p72 = scmp.eq.s32.totalorder %s25, 0
      %p73 = por %p71, %p72
      %s75 = sadd.s32 %s74, 1
      %p78 = scmp.eq.s32.totalorder %s19, 1
      %p79 = scmp.ne.s32.totalorder %s74, %s76
      %p80 = scmp.eq.s32.totalorder %s19, 0
      %p81 = por %p79, %p80
      %p82 = scmp.ne.s32.totalorder %s74, %s76
      %p83 = scmp.eq.s32.totalorder %s24, 1
      %p84 = por %p82, %p83
      %p85 = scmp.ne.s32.totalorder %s76, %s77
      %p86 = scmp.eq.s32.totalorder %s24, 0
      %p87 = por %p85, %p86
      %p88 = scmp.ne.s32.totalorder %s76, %s77
      %p89 = scmp.eq.s32.totalorder %s25, 1
      %p90 = por %p88, %p89
      %p92 = scmp.ne.s32.totalorder %s77, %s91
      %p93 = scmp.eq.s32.totalorder %s25, 0
      %p94 = por %p92, %p93
      %s96 = sadd.s32 %s95, 1
      %p99 = scmp.eq.s32.totalorder %s19, 1
      %p100 = scmp.ne.s32.totalorder %s95, %s97
      %p101 = scmp.eq.s32.totalorder %s19, 0
      %p102 = por %p100, %p101
      %p103 = scmp.ne.s32.totalorder %s95, %s97
      %p104 = scmp.eq.s32.totalorder %s24, 1
      %p105 = por %p103, %p104
      %p106 = scmp.ne.s32.totalorder %s97, %s98
      %p107 = scmp.eq.s32.totalorder %s24, 0
      %p108 = por %p106, %p107
      %p109 = scmp.ne.s32.totalorder %s97, %s98
      %p110 = scmp.eq.s32.totalorder %s25, 1
      %p111 = por %p109, %p110
      %p113 = scmp.ne.s32.totalorder %s98, %s112
      %p114 = scmp.eq.s32.totalorder %s25, 0
      %p115 = por %p113, %p114
      %s117 = sadd.s32 %s116, 1
      %p120 = scmp.eq.s32.totalorder %s19, 1
      %p121 = scmp.ne.s32.totalorder %s116, %s118
      %p122 = scmp.eq.s32.totalorder %s19, 0
      %p123 = por %p121, %p122
      %p124 = scmp.ne.s32.totalorder %s116, %s118
      %p125 = scmp.eq.s32.totalorder %s24, 1
      %p126 = por %p124, %p125
      %p127 = scmp.ne.s32.totalorder %s118, %s119
      %p128 = scmp.eq.s32.totalorder %s24, 0
      %p129 = por %p127, %p128
      %p130 = scmp.ne.s32.totalorder %s118, %s119
      %p131 = scmp.eq.s32.totalorder %s25, 1
      %p132 = por %p130, %p131
      %p134 = scmp.ne.s32.totalorder %s119, %s133
      %p135 = scmp.eq.s32.totalorder %s25, 0
      %p136 = por %p134, %p135
      %s138 = sadd.s32 %s137, 1
      %p141 = scmp.eq.s32.totalorder %s19, 1
      %p142 = scmp.ne.s32.totalorder %s137, %s139
      %p143 = scmp.eq.s32.totalorder %s19, 0
      %p144 = por %p142, %p143
      %p145 = scmp.ne.s32.totalorder %s137, %s139
      %p146 = scmp.eq.s32.totalorder %s24, 1
      %p147 = por %p145, %p146
      %p148 = scmp.ne.s32.totalorder %s139, %s140
      %p149 = scmp.eq.s32.totalorder %s24, 0
      %p150 = por %p148, %p149
      %p151 = scmp.ne.s32.totalorder %s139, %s140
      %p152 = scmp.eq.s32.totalorder %s25, 1
      %p153 = por %p151, %p152
      %p155 = scmp.ne.s32.totalorder %s140, %s154
      %p156 = scmp.eq.s32.totalorder %s25, 0
      %p157 = por %p155, %p156
      %s159 = sadd.s32 %s158, 1
      %p162 = scmp.eq.s32.totalorder %s19, 1
      %p163 = scmp.ne.s32.totalorder %s158, %s160
      %p164 = scmp.eq.s32.totalorder %s19, 0
      %p165 = por %p163, %p164
      %p166 = scmp.ne.s32.totalorder %s158, %s160
      %p167 = scmp.eq.s32.totalorder %s24, 1
      %p168 = por %p166, %p167
      %p169 = scmp.ne.s32.totalorder %s160, %s161
      %p170 = scmp.eq.s32.totalorder %s24, 0
      %p171 = por %p169, %p170
      %p172 = scmp.ne.s32.totalorder %s160, %s161
      %p173 = scmp.eq.s32.totalorder %s25, 1
      %p174 = por %p172, %p173
      %p176 = scmp.ne.s32.totalorder %s161, %s175
      %p177 = scmp.eq.s32.totalorder %s25, 0
      %p178 = por %p176, %p177
      %s180 = sadd.s32 %s179, 1
      %p183 = scmp.eq.s32.totalorder %s19, 1
      %p184 = scmp.ne.s32.totalorder %s179, %s181
      %p185 = scmp.eq.s32.totalorder %s19, 0
      %p186 = por %p184, %p185
      %p187 = scmp.ne.s32.totalorder %s179, %s181
      %p188 = scmp.eq.s32.totalorder %s24, 1
      %p189 = por %p187, %p188
      %p190 = scmp.ne.s32.totalorder %s181, %s182
      %p191 = scmp.eq.s32.totalorder %s24, 0
      %p192 = por %p190, %p191
      %p193 = scmp.ne.s32.totalorder %s181, %s182
      %p194 = scmp.eq.s32.totalorder %s25, 1
      %p195 = por %p193, %p194
      %p197 = scmp.ne.s32.totalorder %s182, %s196
      %p198 = scmp.eq.s32.totalorder %s25, 0
      %p199 = por %p197, %p198
      %s201 = sadd.s32 %s200, 1
      %p204 = scmp.eq.s32.totalorder %s19, 1
      %p205 = scmp.ne.s32.totalorder %s200, %s202
      %p206 = scmp.eq.s32.totalorder %s19, 0
      %p207 = por %p205, %p206
      %p208 = scmp.ne.s32.totalorder %s200, %s202
      %p209 = scmp.eq.s32.totalorder %s24, 1
      %p210 = por %p208, %p209
      %p211 = scmp.ne.s32.totalorder %s202, %s203
      %p212 = scmp.eq.s32.totalorder %s24, 0
      %p213 = por %p211, %p212
      %p214 = scmp.ne.s32.totalorder %s202, %s203
      %p215 = scmp.eq.s32.totalorder %s25, 1
      %p216 = por %p214, %p215
      %p218 = scmp.ne.s32.totalorder %s203, %s217
      %p219 = scmp.eq.s32.totalorder %s25, 0
      %p220 = por %p218, %p219
      %s221 = ssub.s32 %s19, %s26
      %p222 = scmp.eq.s32.totalorder %s221, 0
      %s224 = sadd.s32 %s223, 1
      %s225 = scalar_select %p222, %s223, %s224
      %p228 = pneg %p222
      %p229 = scmp.eq.s32.totalorder %s19, 1
      %p230 = por %p228, %p229
      %p231 = scmp.ne.s32.totalorder %s223, %s226
      %p232 = scmp.eq.s32.totalorder %s19, 0
      %p233 = por %p231, %p232
      %p234 = scmp.ne.s32.totalorder %s223, %s226
      %p235 = scmp.eq.s32.totalorder %s24, 1
      %p236 = por %p234, %p235
      %p237 = scmp.ne.s32.totalorder %s226, %s227
      %p238 = scmp.eq.s32.totalorder %s24, 0
      %p239 = por %p237, %p238
      %p240 = scmp.ne.s32.totalorder %s226, %s227
      %p241 = scmp.eq.s32.totalorder %s25, 1
      %p242 = por %p240, %p241
      %p244 = scmp.ne.s32.totalorder %s227, %s243
      %p245 = scmp.eq.s32.totalorder %s25, 0
      %p246 = por %p244, %p245
      %p247 = scmp.le.s32.totalorder 1, %s19
      %p248 = scmp.lt.s32.totalorder %s19, 3
      %p249 = pnand %p247, %p248
      %p250 = pneg %p249
      // Predicated region
      $region9: #{tpu_custom_call.1} parent=5 // pred_check
        _
      $region10: #{tpu_custom_call.1} parent=5 // pred_check_branch
        %252 = sbr.rel (%p249) target = $region12
      $region11: #{tpu_custom_call.1} parent=5 // pred_region
        %s253 = ssub.s32 %s19, 1
        // Predicated region
        $region13: #{tpu_custom_call.1} parent=11 // pred_check
          %p254 = pneg %p66
        $region14: #{tpu_custom_call.1} parent=11 // pred_check_branch
          %256 = sbr.rel (%p254) target = $region16
        $region15: #{tpu_custom_call.1} parent=11 // pred_region
          %258 = vsyncadd [#allocation4], 0
          %s259 = sshll.u32 %s1, 4
          %s260 = int_to_ptr.hbm [resolvable:$true] %s259
          %s261 = sshll.u32 [#allocation3], 4
          %s262 = int_to_ptr.vmem [resolvable:$true] %s261
          %267 = dma.hbm_to_vmem [thread:$0]  %s260, 192, %s262, [#allocation4], 64, 64, 4
        $region16: #{tpu_custom_call.1} parent=11 // pred_fallthru
          _
        // Predicated region
        $region17: #{tpu_custom_call.1} parent=11 // pred_check
          %p268 = pneg %p87
        $region18: #{tpu_custom_call.1} parent=11 // pred_check_branch
          %270 = sbr.rel (%p268) target = $region20
        $region19: #{tpu_custom_call.1} parent=11 // pred_region
          _
        $region20: #{tpu_custom_call.1} parent=11 // pred_fallthru
          _
        // Predicated region
        $region21: #{tpu_custom_call.1} parent=11 // pred_check
          %p271 = pneg %p108
        $region22: #{tpu_custom_call.1} parent=11 // pred_check_branch
          %273 = sbr.rel (%p271) target = $region24
        $region23: #{tpu_custom_call.1} parent=11 // pred_region
          _
        $region24: #{tpu_custom_call.1} parent=11 // pred_fallthru
          _
        // Predicated region
        $region25: #{tpu_custom_call.1} parent=11 // pred_check
          %p274 = pneg %p129
        $region26: #{tpu_custom_call.1} parent=11 // pred_check_branch
          %276 = sbr.rel (%p274) target = $region28
        $region27: #{tpu_custom_call.1} parent=11 // pred_region
          _
        $region28: #{tpu_custom_call.1} parent=11 // pred_fallthru
          _
        // Predicated region
        $region29: #{tpu_custom_call.1} parent=11 // pred_check
          %p277 = pneg %p150
        $region30: #{tpu_custom_call.1} parent=11 // pred_check_branch
          %279 = sbr.rel (%p277) target = $region32
        $region31: #{tpu_custom_call.1} parent=11 // pred_region
          _
        $region32: #{tpu_custom_call.1} parent=11 // pred_fallthru
          _
        // Predicated region
        $region33: #{tpu_custom_call.1} parent=11 // pred_check
          %p280 = pneg %p171
        $region34: #{tpu_custom_call.1} parent=11 // pred_check_branch
          %282 = sbr.rel (%p280) target = $region36
        $region35: #{tpu_custom_call.1} parent=11 // pred_region
          _
        $region36: #{tpu_custom_call.1} parent=11 // pred_fallthru
          _
        // Predicated region
        $region37: #{tpu_custom_call.1} parent=11 // pred_check
          %p283 = pneg %p192
        $region38: #{tpu_custom_call.1} parent=11 // pred_check_branch
          %285 = sbr.rel (%p283) target = $region40
        $region39: #{tpu_custom_call.1} parent=11 // pred_region
          _
        $region40: #{tpu_custom_call.1} parent=11 // pred_fallthru
          _
        // Predicated region
        $region41: #{tpu_custom_call.1} parent=11 // pred_check
          %p286 = pneg %p213
        $region42: #{tpu_custom_call.1} parent=11 // pred_check_branch
          %288 = sbr.rel (%p286) target = $region44
        $region43: #{tpu_custom_call.1} parent=11 // pred_region
          _
        $region44: #{tpu_custom_call.1} parent=11 // pred_fallthru
          _
      $region12: #{tpu_custom_call.1} parent=5 // pred_fallthru
        _
      %p289 = scmp.lt.s32.totalorder %s19, 2
      // Predicated region
      $region45: #{tpu_custom_call.1} parent=5 // pred_check
        %p290 = pneg %p289
      $region46: #{tpu_custom_call.1} parent=5 // pred_check_branch
        %292 = sbr.rel (%p290) target = $region48
      $region47: #{tpu_custom_call.1} parent=5 // pred_region
        // Predicated region
        $region49: #{tpu_custom_call.1} parent=47 // pred_check
          %p293 = pneg %p39
        $region50: #{tpu_custom_call.1} parent=47 // pred_check_branch
          %295 = sbr.rel (%p293) target = $region52
        $region51: #{tpu_custom_call.1} parent=47 // pred_region
          %p296 = scmp.lt.s32.totalorder %s19, 1
          %s297 = scalar_select %p296, %s19, 1
          %s298 = smul.addr %s297, 2
          %s299 = smul.addr %s298, 8
          %s300 = scalar_lea.vmem %s0, %s299
        $region52: #{tpu_custom_call.1} parent=47 // pred_fallthru
          _
      $region48: #{tpu_custom_call.1} parent=5 // pred_fallthru
        _
      %p301 = scmp.le.s32.totalorder 1, %s19
      %p302 = scmp.lt.s32.totalorder %s19, 3
      %p303 = pnand %p301, %p302
      %p304 = pneg %p303
      // Predicated region
      $region53: #{tpu_custom_call.1} parent=5 // pred_check
        _
      $region54: #{tpu_custom_call.1} parent=5 // pred_check_branch
        %306 = sbr.rel (%p303) target = $region56
      $region55: #{tpu_custom_call.1} parent=5 // pred_region
        %s307 = ssub.s32 %s19, 1
        // Predicated region
        $region57: #{tpu_custom_call.1} parent=55 // pred_check
          %p308 = pneg %p66
        $region58: #{tpu_custom_call.1} parent=55 // pred_check_branch
          %310 = sbr.rel (%p308) target = $region60
        $region59: #{tpu_custom_call.1} parent=55 // pred_region
          %312 = dma.done [#allocation4], 192
        $region60: #{tpu_custom_call.1} parent=55 // pred_fallthru
          _
        %p313 = scmp.lt.s32.totalorder %s24, 1
        %s314 = scalar_select %p313, %s24, 1
        %s315 = smul.addr %s314, 2
        %s316 = smul.addr %s315, 8
        %s317 = scalar_lea.vmem %s0, %s316
        %p318 = pneg %p45
        %p319 = pneg %p42
        %p320 = pneg %p66
        %p321 = pneg %p63
        %p322 = pneg %p87
        %p323 = pneg %p84
        %p324 = pneg %p108
        %p325 = pneg %p105
        %p326 = pneg %p129
        %p327 = pneg %p126
        %p328 = pneg %p150
        %p329 = pneg %p147
        %p330 = pneg %p171
        %p331 = pneg %p168
        %p332 = pneg %p192
        %p333 = pneg %p189
        %p334 = pneg %p213
        %p335 = pneg %p210
        %p336 = pneg %p239
        %p337 = pneg %p236
        %s338 = sand.u32 %s226, 1
        %s339 = scalar_lea.sflag [#allocation5], %s338
        %s340 = sand.u32 %s226, 1
        %s341 = scalar_lea.vmem [#allocation6], %s340
        %p342 = scmp.lt.s32.totalorder %s24, 1
        %s343 = scalar_select %p342, %s24, 1
        %s344 = smul.addr %s343, 2
        %s345 = smul.addr %s344, 8
        %s346 = scalar_lea.vmem %s0, %s345
        %v347 = vld [vmem:[%s346] ss:$2 sm:$0x7f]
        %v348 = vld [vmem:[#allocation3] sm:$0xf]
        %s349 = scalar_lea.vmem %s346, 1
        %v350 = vld [vmem:[%s349] ss:$2 sm:$0x7f]
        %s351 = scalar_lea.vmem [#allocation3], 4
        %v352 = vld [vmem:[%s351] sm:$0xf]
        %vm353 = vcmask 31744
        %v355 = vsel %vm353, %v350, 0
        %vm357 = vcmask 1043456
        %v359 = vsel %vm357, %v352, 0
        %361 = vmatpush.msra.mxu0 0.0
        %362 = vmatpush.msra.mxu0 0.0
        %363 = vmatpush.msra.mxu0 0.0
        %364 = vmatpush.msra.mxu0 0.0
        %365 = vmatpush.msra.mxu0 0.0
        %366 = vmatpush.msra.mxu0 0.0
        %367 = vmatpush.msra.mxu0 0.0
        %368 = vmatpush.msra.mxu0 0.0
        %369 = vmatpush.msra.mxu0 0.0
        %370 = vmatpush.msra.mxu0 0.0
        %371 = vmatpush.msra.mxu0 0.0
        %372 = vmatpush.msra.mxu0 0.0
        %373 = vmatpush.msra.mxu0 0.0
        %374 = vmatpush.msra.mxu0 0.0
        %375 = vmatpush.msra.mxu0 0.0
        %376 = vmatpush.msra.mxu0 %v359
        %377 = vmatmul.f32.gmra.mxu0 %v355
        %v378 = vpop.f32.mrf.mxu0
        %v379 = vadd.f32 0.0, %v378
        %380 = vdwg.mxu0
        %v382 = vsel %vm353, %v347, 0
        %v385 = vsel %vm357, %v348, 0
        %387 = vmatpush.msra.mxu0 0.0
        %388 = vmatpush.msra.mxu0 0.0
        %389 = vmatpush.msra.mxu0 0.0
        %390 = vmatpush.msra.mxu0 0.0
        %391 = vmatpush.msra.mxu0 0.0
        %392 = vmatpush.msra.mxu0 0.0
        %393 = vmatpush.msra.mxu0 0.0
        %394 = vmatpush.msra.mxu0 0.0
        %395 = vmatpush.msra.mxu0 0.0
        %396 = vmatpush.msra.mxu0 0.0
        %397 = vmatpush.msra.mxu0 0.0
        %398 = vmatpush.msra.mxu0 0.0
        %399 = vmatpush.msra.mxu0 0.0
        %400 = vmatpush.msra.mxu0 0.0
        %401 = vmatpush.msra.mxu0 0.0
        %402 = vmatpush.msra.mxu0 %v385
        %403 = vmatmul.f32.gmra.mxu0 %v382
        %v404 = vpop.f32.mrf.mxu0
        %v405 = vadd.f32 %v379, %v404
        %406 = vdwg.mxu0
        %s407 = scalar_lea.vmem %s346, 2
        %v408 = vld [vmem:[%s407] ss:$2 sm:$0x7f]
        %s409 = scalar_lea.vmem [#allocation3], 8
        %v410 = vld [vmem:[%s409] sm:$0xf]
        %v412 = vsel %vm353, %v408, 0
        %v415 = vsel %vm357, %v410, 0
        %417 = vmatpush.msra.mxu0 0.0
        %418 = vmatpush.msra.mxu0 0.0
        %419 = vmatpush.msra.mxu0 0.0
        %420 = vmatpush.msra.mxu0 0.0
        %421 = vmatpush.msra.mxu0 0.0
        %422 = vmatpush.msra.mxu0 0.0
        %423 = vmatpush.msra.mxu0 0.0
        %424 = vmatpush.msra.mxu0 0.0
        %425 = vmatpush.msra.mxu0 0.0
        %426 = vmatpush.msra.mxu0 0.0
        %427 = vmatpush.msra.mxu0 0.0
        %428 = vmatpush.msra.mxu0 0.0
        %429 = vmatpush.msra.mxu0 0.0
        %430 = vmatpush.msra.mxu0 0.0
        %431 = vmatpush.msra.mxu0 0.0
        %432 = vmatpush.msra.mxu0 %v415
        %433 = vmatmul.f32.gmra.mxu0 %v412
        %v434 = vpop.f32.mrf.mxu0
        %v435 = vadd.f32 0.0, %v434
        %436 = vdwg.mxu0
        %v437 = vadd.f32 %v405, %v435
        %v438 = vld [vmem:[%s2] sm:$0x1]
        %v440 = vperm.slane %v438, 0
        %v442 = vadd.f32 %v437, %v440
        %v443 = vmax.f32 %v442, 0.0
        %vm444 = vcmask 63488
        %445 = vst.msk [vmem:[#allocation2] sm:$0x7f] %vm444, %v443
        %v446 = vld [vmem:[#allocation2] ss:$2 sm:$0x7]
        %v447 = vld [vmem:[%s3] sm:$0xff]
        %s448 = scalar_lea.vmem [#allocation2], 1
        %v449 = vld [vmem:[%s448] ss:$2 sm:$0x7]
        %s450 = scalar_lea.vmem %s3, 8
        %v451 = vld [vmem:[%s450] sm:$0xff]
        %vm452 = vcmask 64512
        %v454 = vsel %vm452, %v449, 0
        %456 = vmatpush.msra.mxu0 0.0
        %457 = vmatpush.msra.mxu0 0.0
        %458 = vmatpush.msra.mxu0 0.0
        %459 = vmatpush.msra.mxu0 0.0
        %460 = vmatpush.msra.mxu0 0.0
        %461 = vmatpush.msra.mxu0 0.0
        %462 = vmatpush.msra.mxu0 0.0
        %463 = vmatpush.msra.mxu0 0.0
        %464 = vmatpush.msra.mxu0 0.0
        %465 = vmatpush.msra.mxu0 0.0
        %466 = vmatpush.msra.mxu0 0.0
        %467 = vmatpush.msra.mxu0 0.0
        %468 = vmatpush.msra.mxu0 0.0
        %469 = vmatpush.msra.mxu0 0.0
        %470 = vmatpush.msra.mxu0 0.0
        %471 = vmatpush.msra.mxu0 %v451
        %472 = vmatmul.f32.gmra.mxu0 %v454
        %v473 = vpop.f32.mrf.mxu0
        %v474 = vadd.f32 0.0, %v473
        %475 = vdwg.mxu0
        %v477 = vsel %vm452, %v446, 0
        %479 = vmatpush.msra.mxu0 0.0
        %480 = vmatpush.msra.mxu0 0.0
        %481 = vmatpush.msra.mxu0 0.0
        %482 = vmatpush.msra.mxu0 0.0
        %483 = vmatpush.msra.mxu0 0.0
        %484 = vmatpush.msra.mxu0 0.0
        %485 = vmatpush.msra.mxu0 0.0
        %486 = vmatpush.msra.mxu0 0.0
        %487 = vmatpush.msra.mxu0 0.0
        %488 = vmatpush.msra.mxu0 0.0
        %489 = vmatpush.msra.mxu0 0.0
        %490 = vmatpush.msra.mxu0 0.0
        %491 = vmatpush.msra.mxu0 0.0
        %492 = vmatpush.msra.mxu0 0.0
        %493 = vmatpush.msra.mxu0 0.0
        %494 = vmatpush.msra.mxu0 %v447
        %495 = vmatmul.f32.gmra.mxu0 %v477
        %v496 = vpop.f32.mrf.mxu0
        %v497 = vadd.f32 %v474, %v496
        %498 = vdwg.mxu0
        %s499 = scalar_lea.vmem [#allocation2], 2
        %v500 = vld [vmem:[%s499] ss:$2 sm:$0x7]
        %s501 = scalar_lea.vmem %s3, 16
        %v502 = vld [vmem:[%s501] sm:$0xff]
        %v504 = vsel %vm452, %v500, 0
        %506 = vmatpush.msra.mxu0 0.0
        %507 = vmatpush.msra.mxu0 0.0
        %508 = vmatpush.msra.mxu0 0.0
        %509 = vmatpush.msra.mxu0 0.0
        %510 = vmatpush.msra.mxu0 0.0
        %511 = vmatpush.msra.mxu0 0.0
        %512 = vmatpush.msra.mxu0 0.0
        %513 = vmatpush.msra.mxu0 0.0
        %514 = vmatpush.msra.mxu0 0.0
        %515 = vmatpush.msra.mxu0 0.0
        %516 = vmatpush.msra.mxu0 0.0
        %517 = vmatpush.msra.mxu0 0.0
        %518 = vmatpush.msra.mxu0 0.0
        %519 = vmatpush.msra.mxu0 0.0
        %520 = vmatpush.msra.mxu0 0.0
        %521 = vmatpush.msra.mxu0 %v502
        %522 = vmatmul.f32.gmra.mxu0 %v504
        %v523 = vpop.f32.mrf.mxu0
        %v524 = vadd.f32 0.0, %v523
        %525 = vdwg.mxu0
        %v526 = vadd.f32 %v497, %v524
        %v527 = vld [vmem:[%s4] sm:$0x1]
        %v529 = vperm.slane %v527, 0
        %v531 = vadd.f32 %v526, %v529
        %v532 = vmax.f32 %v531, 0.0
        %vm533 = vcmask 124928
        %v534 = vsel %vm533, %v532, -inf
        %v535 = vrot.slane %v534, 4
        %v536 = vmax.f32 %v534, %v535
        %v537 = vrot.slane %v536, 2
        %v538 = vmax.f32 %v536, %v537
        %v539 = vrot.slane %v538, 1
        %v540 = vmax.f32 %v538, %v539
        %v541 = vld [vmem:[%s5] sm:$0xff]
        %v542 = vld [vmem:[%s5 + $0x8] sm:$0xff]
        %v543 = vld [vmem:[%s6] sm:$0x1]
        %vm544 = vcmask 130048
        %v546 = vsel %vm544, %v540, 0
        %548 = vmatpush.msra.mxu0 0.0
        %549 = vmatpush.msra.mxu0 0.0
        %550 = vmatpush.msra.mxu0 0.0
        %551 = vmatpush.msra.mxu0 0.0
        %552 = vmatpush.msra.mxu0 0.0
        %553 = vmatpush.msra.mxu0 0.0
        %554 = vmatpush.msra.mxu0 0.0
        %555 = vmatpush.msra.mxu0 0.0
        %556 = vmatpush.msra.mxu0 0.0
        %557 = vmatpush.msra.mxu0 0.0
        %558 = vmatpush.msra.mxu0 0.0
        %559 = vmatpush.msra.mxu0 0.0
        %560 = vmatpush.msra.mxu0 0.0
        %561 = vmatpush.msra.mxu0 0.0
        %562 = vmatpush.msra.mxu0 %v542
        %563 = vmatpush.msra.mxu0 %v541
        %564 = vmatmul.f32.gmra.mxu0 %v546
        %v565 = vpop.f32.mrf.mxu0
        %v566 = vadd.f32 %v543, %v565
        %567 = vdwg.mxu0
        %vm568 = vcmask 253952
        %v569 = vsel %vm568, %v566, 0.0
        %570 = vadd.xlane.f32.xlu0 %v569
        %v571 = vpop.xlane.xlu0 %570
        %v572 = vrcp.pop 32.0
        %v573 = vmul.f32 32.0, %v572
        %v574 = vsub.f32 1.0, %v573
        %v575 = vmul.f32 %v572, %v574
        %v576 = vadd.f32 %v572, %v575
        %vm577 = vweird.f32 %v572
        %v578 = vsel %vm577, %v572, %v576
        %v579 = vmul.f32 %v571, %v578
        %v580 = vsub.f32 %v566, %v579
        %v581 = vmul.f32 %v580, %v580
        %v582 = vsel %vm568, %v581, 0.0
        %583 = vadd.xlane.f32.xlu0 %v582
        %v584 = vpop.xlane.xlu0 %583
        %v585 = vmul.f32 %v584, %v578
        %v586 = vadd.f32 %v585, 1e-05
        %v587 = vrsqrt.pop %v586
        %v588 = vmul.f32 %v587, %v586
        %v589 = vmul.f32 %v588, %v587
        %v590 = vmul.f32 0.5, %v589
        %v591 = vsub.f32 1.5, %v590
        %v592 = vmul.f32 %v587, %v591
        %vm593 = vweird.f32 %v586
        %vm594 = vweird.f32 %v587
        %vm595 = vmor %vm593, %vm594
        %v596 = vsel %vm595, %v587, %v592
        %v597 = vmul.f32 %v580, %v596
        %v598 = vld [vmem:[%s7] sm:$0x1]
        %v599 = vmul.f32 %v597, %v598
        %v600 = vld [vmem:[%s8] sm:$0x1]
        %v601 = vadd.f32 %v599, %v600
        %602 = vst.msk [vmem:[%s341] sm:$0x1] %vm568, %v601
        %s603 = sand.u32 %s226, 1
        %s604 = scalar_lea.sflag [#allocation5], %s603
        %s605 = sand.u32 %s226, 1
        %s606 = scalar_lea.vmem [#allocation6], %s605
        // Predicated region
        $region61: #{tpu_custom_call.1} parent=55 // pred_check
          %p607 = pneg %p236
        $region62: #{tpu_custom_call.1} parent=55 // pred_check_branch
          %609 = sbr.rel (%p607) target = $region64
        $region63: #{tpu_custom_call.1} parent=55 // pred_region
          %611 = vsyncadd %s604, 0
          %s612 = scalar_lea.hbm %s9, %s24
          %s614 = sshll.u32 %s606, 4
          %s615 = int_to_ptr.vmem [resolvable:$true] %s614
          %s616 = sshll.u32 %s612, 4
          %s617 = int_to_ptr.hbm [resolvable:$true] %s616
          %619 = dma.vmem_to_hbm [thread:$0]  %s615, 16, %s617, %s604
        $region64: #{tpu_custom_call.1} parent=55 // pred_fallthru
          _
      $region56: #{tpu_custom_call.1} parent=5 // pred_fallthru
        _
      %p620 = scmp.le.s32.totalorder 2, %s19
      // Predicated region
      $region65: #{tpu_custom_call.1} parent=5 // pred_check
        %p621 = pneg %p620
      $region66: #{tpu_custom_call.1} parent=5 // pred_check_branch
        %623 = sbr.rel (%p621) target = $region68
      $region67: #{tpu_custom_call.1} parent=5 // pred_region
        %s624 = ssub.s32 %s19, 2
        // Predicated region
        $region69: #{tpu_custom_call.1} parent=67 // pred_check
          %p625 = pneg %p242
        $region70: #{tpu_custom_call.1} parent=67 // pred_check_branch
          %627 = sbr.rel (%p625) target = $region72
        $region71: #{tpu_custom_call.1} parent=67 // pred_region
          %s628 = sand.u32 %s227, 1
          %s629 = scalar_lea.sflag [#allocation5], %s628
          %s630 = sand.u32 %s227, 1
          %s631 = scalar_lea.vmem [#allocation6], %s630
          %633 = dma.done %s629, 16
        $region72: #{tpu_custom_call.1} parent=67 // pred_fallthru
          _
      $region68: #{tpu_custom_call.1} parent=5 // pred_fallthru
        _
    $region6: #{tpu_custom_call.1} parent=1 // loop_footer
      %s23 = sadd.s32 1, %s19
    $region7: #{tpu_custom_call.1} parent=1 // loop_footer_branch
      %18 = sbr.rel target = $region3
    $region8: #{tpu_custom_call.1} parent=1 // loop_exit
      _
    %634 = vsyncpa [#allocation4], 1
    %s635 = scalar_lea.sflag [#allocation4], 1
    %636 = vsyncpa %s635, 1
    %637 = vsyncpa [#allocation5], 1
    %s638 = scalar_lea.sflag [#allocation5], 1
    %639 = vsyncpa %s638, 1

</llo_original>
